<compile_context>
chip_gen: v5e
topology: v5e:2x2
jax: 0.10.0
libtpu: 0.0.40
codegen_flags: <defaults>
</compile_context>

<pallas_src>
import functools

import numpy as np
import jax
import jax.numpy as jnp
from jax.experimental import pallas as pl
from jax.experimental.pallas import tpu as pltpu

try:  # the torch reference uses scipy's solver; fall back to pure NumPy
    from scipy.optimize import linear_sum_assignment as _scipy_lsa
except Exception:  # pragma: no cover
    _scipy_lsa = None


LANE = 128
MAX_TQ = 1024      # query-tile cap (rows, multiple of 8)
MAX_TT = 512       # target-tile cap (lanes, multiple of 128)


def _round_up(x, m):
    return ((x + m - 1) // m) * m


# ----------------------------------------------------------------------------
# Pallas kernel: one (Q-tile, T-tile) block of the matching-cost matrix.
# ----------------------------------------------------------------------------
def _make_cost_kernel(*, use_focal_loss, alpha, gamma, w_class, w_giou):
    def kernel(logits_ref, pfeat_ref, onehot_ct_ref, tfeat_ref, cost_ref):
        # ---- classification cost (weights folded at trace time) -------------
        if use_focal_loss:
            # sigmoid commutes with a one-hot gather: gather raw logits on the
            # MXU, then do sigmoid/log only on the [TQ, TT] result.
            z = jnp.dot(logits_ref[...], onehot_ct_ref[...],
                        preferred_element_type=jnp.float32,
                        precision=jax.lax.Precision.HIGHEST)
            p = jax.nn.sigmoid(z)
            powg = (lambda x: x * x) if gamma == 2.0 else (lambda x: x ** gamma)
            pos = (alpha * w_class) * powg(1.0 - p) * (-jnp.log(p + 1e-8))
            neg = ((1.0 - alpha) * w_class) * powg(p) * (-jnp.log(1.0 - p + 1e-8))
            cost = pos - neg
        else:
            prob = jax.nn.softmax(logits_ref[...], axis=-1)
            # one-hot was pre-scaled by -w_class on host
            cost = jnp.dot(prob, onehot_ct_ref[...],
                           preferred_element_type=jnp.float32,
                           precision=jax.lax.Precision.HIGHEST)

        pf = pfeat_ref[...]       # [TQ, 8] = (w_bbox*cx,cy,w,h, x1,y1,x2,y2)
        tf = tfeat_ref[...]       # [8, TT] same rows, targets on lanes

        # ---- L1 bbox cost (w_bbox folded into the cxcywh slabs on host) -----
        # accumulate straight into `cost`: no zeros-init, no final combine add.
        for k in range(4):
            cost = cost + jnp.abs(pf[:, k:k + 1] - tf[k:k + 1, :])

        # ---- GIoU cost (xyxy precomputed on host) ---------------------------
        px1, py1, px2, py2 = (pf[:, 4 + k:5 + k] for k in range(4))   # [TQ,1]
        tx1, ty1, tx2, ty2 = (tf[4 + k:5 + k, :] for k in range(4))   # [1,TT]

        area_p = (px2 - px1) * (py2 - py1)                            # [TQ,1]
        area_t = (tx2 - tx1) * (ty2 - ty1)                            # [1,TT]

        iw = jnp.maximum(jnp.minimum(px2, tx2) - jnp.maximum(px1, tx1), 0.0)
        ih = jnp.maximum(jnp.minimum(py2, ty2) - jnp.maximum(py1, ty1), 0.0)
        inter = iw * ih                                               # [TQ,TT]
        union = area_p + area_t - inter

        # enclosing box: valid boxes (including unit dummy padding) always give
        # non-negative width/height, so no clamp is needed here.
        ew = jnp.maximum(px2, tx2) - jnp.minimum(px1, tx1)
        eh = jnp.maximum(py2, ty2) - jnp.minimum(py1, ty1)
        enc = ew * eh

        # EUP approx reciprocal + one Newton step: near-exact, divides stay
        # off the saturating VALU path, no assignment flips on near-ties.
        inv_union = pl.reciprocal(union, approx=True)
        inv_union = inv_union * (2.0 - union * inv_union)
        inv_enc = pl.reciprocal(enc, approx=True)
        inv_enc = inv_enc * (2.0 - enc * inv_enc)
        # giou = iou - (enc - union)/enc = inter/union - 1 + union/enc
        giou = inter * inv_union - 1.0 + union * inv_enc

        cost_ref[...] = cost - w_giou * giou
    return kernel


# ----------------------------------------------------------------------------
# Single fused device dispatch: padding + feature slabs + one-hot + pallas_call.
# ----------------------------------------------------------------------------
@functools.partial(jax.jit, static_argnames=(
    "use_focal_loss", "alpha", "gamma", "w_class", "w_bbox", "w_giou"))
def _cost_matrix_padded(pred_logits, pred_boxes, tgt_labels, tgt_boxes, *,
                        use_focal_loss, alpha, gamma, w_class, w_bbox, w_giou):
    bs, nq, nc = pred_logits.shape
    Q = bs * nq
    T = int(tgt_labels.shape[0])

    C_pad = _round_up(nc, LANE)

    # Q tiling: biggest tiles under the cap, but aim for >= 2 tiles so the
    # "parallel" axis shards across both TensorCores on v7x.
    n_q_tiles = max(2, -(-Q // MAX_TQ))
    TQ = _round_up(-(-Q // n_q_tiles), 8)
    Q_pad = _round_up(Q, TQ)

    # T tiling: lane-dense multiple-of-128 tile that divides T_pad.
    T_pad = _round_up(max(T, 1), LANE)
    if T_pad <= MAX_TT:
        TT = T_pad
    else:
        TT = max(d for d in (512, 384, 256, 128) if T_pad % d == 0)

    # logits [Q_pad, C_pad]; padded classes: 0 for focal (one-hot rows are 0),
    # very negative for softmax so normalization is unchanged.
    c_pad_val = 0.0 if use_focal_loss else -1e30
    logits_p = jnp.full((Q_pad, C_pad), c_pad_val, dtype=jnp.float32)
    logits_p = logits_p.at[:Q, :nc].set(
        pred_logits.reshape(Q, nc).astype(jnp.float32))

    # non-degenerate unit dummy boxes for padded rows/cols -> no NaN/Inf in the
    # (discarded) padded region.
    dummy = jnp.array([0.5, 0.5, 1.0, 1.0], jnp.float32)

    # pred box slab [Q_pad, 8] = (w_bbox*cxcywh, x1,y1,x2,y2)
    pb = jnp.broadcast_to(dummy, (Q_pad, 4))
    pb = pb.at[:Q].set(pred_boxes.reshape(Q, 4).astype(jnp.float32))
    pfeat = jnp.concatenate(
        [w_bbox * pb, pb[:, :2] - 0.5 * pb[:, 2:], pb[:, :2] + 0.5 * pb[:, 2:]],
        axis=1)

    # target box slab [8, T_pad] (same rows, targets on lanes)
    tb = jnp.broadcast_to(dummy, (T_pad, 4))
    tb = tb.at[:T].set(tgt_boxes.astype(jnp.float32))
    tfeat = jnp.concatenate(
        [w_bbox * tb, tb[:, :2] - 0.5 * tb[:, 2:], tb[:, :2] + 0.5 * tb[:, 2:]],
        axis=1).T

    # pre-transposed one-hot [C_pad, T_pad]; padded target columns stay zero.
    # For the softmax branch it is pre-scaled by -w_class (weight folding).
    onehot_val = 1.0 if use_focal_loss else -w_class
    onehot_ct = jnp.zeros((C_pad, T_pad), jnp.float32)
    onehot_ct = onehot_ct.at[tgt_labels, jnp.arange(T)].set(onehot_val)

    kernel = _make_cost_kernel(use_focal_loss=use_focal_loss, alpha=alpha,
                               gamma=gamma, w_class=w_class, w_giou=w_giou)

    cost_pad = pl.pallas_call(
        kernel,
        out_shape=jax.ShapeDtypeStruct((Q_pad, T_pad), jnp.float32),
        grid=(Q_pad // TQ, T_pad // TT),
        in_specs=[
            pl.BlockSpec((TQ, C_pad), lambda i, j: (i, 0)),
            pl.BlockSpec((TQ, 8), lambda i, j: (i, 0)),
            pl.BlockSpec((C_pad, TT), lambda i, j: (0, j)),
            pl.BlockSpec((8, TT), lambda i, j: (0, j)),
        ],
        out_specs=pl.BlockSpec((TQ, TT), lambda i, j: (i, j)),
        compiler_params=pltpu.CompilerParams(
            dimension_semantics=("parallel", "parallel"),
            vmem_limit_bytes=32 * 1024 * 1024),
    )(logits_p, pfeat, onehot_ct, tfeat)
    return cost_pad


# ----------------------------------------------------------------------------
# Pure-JAX reference of the cost matrix (mirrors the torch matcher exactly).
# ----------------------------------------------------------------------------
def _cost_reference(pred_logits, pred_boxes, tgt_labels, tgt_boxes, *,
                    use_focal_loss, alpha, gamma, w_class, w_bbox, w_giou):
    bs, nq, nc = pred_logits.shape
    logits = pred_logits.reshape(-1, nc).astype(jnp.float32)
    pboxes = pred_boxes.reshape(-1, 4).astype(jnp.float32)
    tboxes = tgt_boxes.astype(jnp.float32)

    if use_focal_loss:
        prob = jax.nn.sigmoid(logits)[:, tgt_labels]
        neg = (1 - alpha) * prob ** gamma * (-jnp.log(1 - prob + 1e-8))
        pos = alpha * (1 - prob) ** gamma * (-jnp.log(prob + 1e-8))
        cost_class = pos - neg
    else:
        cost_class = -jax.nn.softmax(logits, axis=-1)[:, tgt_labels]

    cost_bbox = jnp.abs(pboxes[:, None, :] - tboxes[None, :, :]).sum(-1)

    def cxcywh_to_xyxy(b):
        return jnp.concatenate([b[:, :2] - 0.5 * b[:, 2:],
                                b[:, :2] + 0.5 * b[:, 2:]], axis=-1)

    pb, tb = cxcywh_to_xyxy(pboxes), cxcywh_to_xyxy(tboxes)
    area_p = (pb[:, 2] - pb[:, 0]) * (pb[:, 3] - pb[:, 1])
    area_t = (tb[:, 2] - tb[:, 0]) * (tb[:, 3] - tb[:, 1])
    lt = jnp.maximum(pb[:, None, :2], tb[None, :, :2])
    rb = jnp.minimum(pb[:, None, 2:], tb[None, :, 2:])
    wh = jnp.clip(rb - lt, 0.0)
    inter = wh[..., 0] * wh[..., 1]
    union = area_p[:, None] + area_t[None, :] - inter
    iou = inter / union
    lt_e = jnp.minimum(pb[:, None, :2], tb[None, :, :2])
    rb_e = jnp.maximum(pb[:, None, 2:], tb[None, :, 2:])
    wh_e = jnp.clip(rb_e - lt_e, 0.0)
    enc = wh_e[..., 0] * wh_e[..., 1]
    giou = iou - (enc - union) / enc
    return w_bbox * cost_bbox + w_class * cost_class - w_giou * giou


# ----------------------------------------------------------------------------
# Host-side exact rectangular linear sum assignment.
# TODO(synk): the Hungarian solve (scipy.optimize.linear_sum_assignment in the
# torch reference) is a sequential host-side algorithm with no clean Pallas
# equivalent; it is done exactly on host (scipy if available, NumPy fallback).
# ----------------------------------------------------------------------------
def _hungarian_numpy(cost):
    """Exact shortest-augmenting-path LAP for a rectangular cost matrix."""
    cost = np.asarray(cost, dtype=np.float64)
    transposed = cost.shape[0] > cost.shape[1]
    if transposed:
        cost = cost.T
    n, m = cost.shape                      # n <= m
    u = np.zeros(n + 1)
    v = np.zeros(m + 1)
    p = np.zeros(m + 1, dtype=np.int64)    # p[j] = row matched to col j (1-based)
    way = np.zeros(m + 1, dtype=np.int64)
    for i in range(1, n + 1):
        p[0] = i
        j0 = 0
        minv = np.full(m + 1, np.inf)
        used = np.zeros(m + 1, dtype=bool)
        while True:
            used[j0] = True
            i0 = p[j0]
            cur = cost[i0 - 1, :] - u[i0] - v[1:]
            free = ~used[1:]
            better = free & (cur < minv[1:])
            minv[1:][better] = cur[better]
            way[1:][better] = j0
            masked = np.where(free, minv[1:], np.inf)
            j1 = int(np.argmin(masked)) + 1
            delta = masked[j1 - 1]
            u[p[used]] += delta
            v[used] -= delta
            minv[~used] -= delta
            j0 = j1
            if p[j0] == 0:
                break
        while j0 != 0:
            j1 = way[j0]
            p[j0] = p[j1]
            j0 = j1
    rows = p[1:] - 1
    cols = np.arange(m, dtype=np.int64)
    valid = rows >= 0
    rows, cols = rows[valid], cols[valid]
    if transposed:
        rows, cols = cols, rows
    order = np.argsort(rows, kind="stable")
    return rows[order].astype(np.int64), cols[order].astype(np.int64)


def linear_sum_assignment(cost):
    if _scipy_lsa is not None:
        r, c = _scipy_lsa(cost)
        return np.asarray(r, dtype=np.int64), np.asarray(c, dtype=np.int64)
    return _hungarian_numpy(cost)


# ----------------------------------------------------------------------------
# HungarianMatcher forward.
# ----------------------------------------------------------------------------
def hungarian_matcher(pred_logits, pred_boxes, tgt_labels, tgt_boxes, sizes, *,
                      weight_dict, use_focal_loss=True, alpha=0.25, gamma=2.0):
    bs, nq, _ = pred_logits.shape
    Q = bs * nq
    T = int(tgt_labels.shape[0])

    params = dict(use_focal_loss=bool(use_focal_loss), alpha=float(alpha),
                  gamma=float(gamma),
                  w_class=float(weight_dict['cost_class']),
                  w_bbox=float(weight_dict['cost_bbox']),
                  w_giou=float(weight_dict['cost_giou']))

    cost_pad = _cost_matrix_padded(pred_logits, pred_boxes, tgt_labels,
                                   tgt_boxes, **params)
    cost_pad = jax.block_until_ready(cost_pad)

    # crop padded rows/columns on host; the device slab stays lane-dense.
    cost_np = np.asarray(cost_pad)[:Q, :T]
    C = cost_np.reshape(bs, nq, T)

    indices = []
    off = 0
    for b, nt in enumerate(sizes):
        i_idx, j_idx = linear_sum_assignment(C[b, :, off:off + nt])
        indices.append((i_idx, j_idx))
        off += nt
    return indices, cost_np, params


# ----------------------------------------------------------------------------
if __name__ == "__main__":
    key = jax.random.PRNGKey(0)
    bs, num_queries, num_classes = 2, 8, 32
    sizes = [3, 4]                         # targets per batch element
    T = sum(sizes)

    k1, k2, k3, k4 = jax.random.split(key, 4)
    pred_logits = jax.random.normal(k1, (bs, num_queries, num_classes), jnp.float32)
    # predicted / target boxes in (cx, cy, w, h), well inside the unit square
    pred_boxes = jnp.concatenate([
        jax.random.uniform(k2, (bs, num_queries, 2), minval=0.25, maxval=0.75),
        jax.random.uniform(k2, (bs, num_queries, 2), minval=0.05, maxval=0.40),
    ], axis=-1)
    tgt_labels = jax.random.randint(k3, (T,), 0, num_classes, dtype=jnp.int32)
    tgt_boxes = jnp.concatenate([
        jax.random.uniform(k4, (T, 2), minval=0.25, maxval=0.75),
        jax.random.uniform(k4, (T, 2), minval=0.05, maxval=0.40),
    ], axis=-1)

    weight_dict = {'cost_class': 2.0, 'cost_bbox': 5.0, 'cost_giou': 2.0}

    indices, cost_kernel, params = hungarian_matcher(
        pred_logits, pred_boxes, tgt_labels, tgt_boxes, sizes,
        weight_dict=weight_dict, use_focal_loss=True, alpha=0.25, gamma=2.0)

    # pure-JAX exact reference of the cost matrix (no Pallas, exact divides)
    cost_ref = _cost_reference(pred_logits, pred_boxes, tgt_labels, tgt_boxes,
                               **params)
    np.testing.assert_allclose(np.asarray(cost_kernel), np.asarray(cost_ref),
                               rtol=5e-3, atol=5e-3)

    # the matching itself must agree with the exact-math reference
    ref_np = np.asarray(cost_ref).reshape(bs, num_queries, T)
    off = 0
    for b, ((i_idx, j_idx), nt) in enumerate(zip(indices, sizes)):
        assert len(i_idx) == len(j_idx) == min(num_queries, nt)
        assert i_idx.dtype == np.int64 and j_idx.dtype == np.int64
        ri, rj = linear_sum_assignment(ref_np[b, :, off:off + nt])
        assert np.array_equal(i_idx, ri) and np.array_equal(j_idx, rj)
        off += nt

    print("KERNEL_OK")
</pallas_src>

<mosaic_0001>
module attributes {stable_mosaic.version = 11 : i64} {
  func.func @kernel(%arg0: i32, %arg1: i32, %arg2: memref<8x128xf32, #tpu.memory_space<vmem>>, %arg3: memref<8x8xf32, #tpu.memory_space<vmem>>, %arg4: memref<128x128xf32, #tpu.memory_space<vmem>>, %arg5: memref<8x128xf32, #tpu.memory_space<vmem>>, %arg6: memref<8x128xf32, #tpu.memory_space<vmem>>) attributes {dimension_semantics = [#tpu.dimension_semantics<parallel>, #tpu.dimension_semantics<parallel>], iteration_bounds = array<i64: 2, 1>, scalar_prefetch = 0 : i64, scratch_operands = 0 : i64, tpu.core_type = #tpu.core_type<tc>, window_params = [{transform_indices = @transform_0, window_bounds = array<i64: 8, 128>}, {transform_indices = @transform_1, window_bounds = array<i64: 8, 8>}, {transform_indices = @transform_2, window_bounds = array<i64: 128, 128>}, {transform_indices = @transform_3, window_bounds = array<i64: 8, 128>}, {transform_indices = @transform_4, window_bounds = array<i64: 8, 128>}]} {
    %c0 = arith.constant 0 : index
    %c0_0 = arith.constant 0 : index
    %0 = vector.load %arg2[%c0, %c0_0] : memref<8x128xf32, #tpu.memory_space<vmem>>, vector<8x128xf32>
    %c0_1 = arith.constant 0 : index
    %c0_2 = arith.constant 0 : index
    %1 = vector.load %arg4[%c0_1, %c0_2] : memref<128x128xf32, #tpu.memory_space<vmem>>, vector<128x128xf32>
    %cst = arith.constant dense<0.000000e+00> : vector<8x128xf32>
    %2 = tpu.matmul %0, %1, %cst {dimension_numbers = #tpu.dot_dimension_numbers<[1], [0], [0], [1], [0, 0, 1, 1], [], []>, precision = #tpu.contract_precision<fp32>} : vector<8x128xf32>, vector<128x128xf32>, vector<8x128xf32> -> vector<8x128xf32>
    %3 = arith.negf %2 : vector<8x128xf32>
    %4 = math.exp %3 : vector<8x128xf32>
    %cst_3 = arith.constant 1.000000e+00 : f32
    %5 = vector.broadcast %cst_3 : f32 to vector<8x128xf32>
    %6 = arith.addf %5, %4 : vector<8x128xf32>
    %7 = arith.divf %5, %6 : vector<8x128xf32>
    %cst_4 = arith.constant 1.000000e+00 : f32
    %8 = vector.broadcast %cst_4 : f32 to vector<8x128xf32>
    %9 = arith.subf %8, %7 : vector<8x128xf32>
    %10 = arith.mulf %9, %9 : vector<8x128xf32>
    %cst_5 = arith.constant 5.000000e-01 : f32
    %11 = vector.broadcast %cst_5 : f32 to vector<8x128xf32>
    %12 = arith.mulf %11, %10 : vector<8x128xf32>
    %cst_6 = arith.constant 9.99999993E-9 : f32
    %13 = vector.broadcast %cst_6 : f32 to vector<8x128xf32>
    %14 = arith.addf %7, %13 : vector<8x128xf32>
    %15 = math.log %14 : vector<8x128xf32>
    %cst_7 = arith.constant 0.000000e+00 : f32
    %16 = vector.broadcast %cst_7 : f32 to vector<8x128xf32>
    %17 = arith.subf %16, %15 : vector<8x128xf32>
    %18 = arith.mulf %12, %17 : vector<8x128xf32>
    %19 = arith.mulf %7, %7 : vector<8x128xf32>
    %cst_8 = arith.constant 1.500000e+00 : f32
    %20 = vector.broadcast %cst_8 : f32 to vector<8x128xf32>
    %21 = arith.mulf %20, %19 : vector<8x128xf32>
    %cst_9 = arith.constant 1.000000e+00 : f32
    %22 = vector.broadcast %cst_9 : f32 to vector<8x128xf32>
    %23 = arith.subf %22, %7 : vector<8x128xf32>
    %cst_10 = arith.constant 9.99999993E-9 : f32
    %24 = vector.broadcast %cst_10 : f32 to vector<8x128xf32>
    %25 = arith.addf %23, %24 : vector<8x128xf32>
    %26 = math.log %25 : vector<8x128xf32>
    %cst_11 = arith.constant 0.000000e+00 : f32
    %27 = vector.broadcast %cst_11 : f32 to vector<8x128xf32>
    %28 = arith.subf %27, %26 : vector<8x128xf32>
    %29 = arith.mulf %21, %28 : vector<8x128xf32>
    %30 = arith.subf %18, %29 : vector<8x128xf32>
    %c0_12 = arith.constant 0 : index
    %c0_13 = arith.constant 0 : index
    %31 = vector.load %arg3[%c0_12, %c0_13] : memref<8x8xf32, #tpu.memory_space<vmem>>, vector<8x8xf32>
    %c0_14 = arith.constant 0 : index
    %c0_15 = arith.constant 0 : index
    %32 = vector.load %arg5[%c0_14, %c0_15] : memref<8x128xf32, #tpu.memory_space<vmem>>, vector<8x128xf32>
    %33 = vector.extract_strided_slice %31 {offsets = [0, 0], sizes = [8, 1], strides = [1, 1]} : vector<8x8xf32> to vector<8x1xf32>
    %34 = vector.extract_strided_slice %32 {offsets = [0, 0], sizes = [1, 128], strides = [1, 1]} : vector<8x128xf32> to vector<1x128xf32>
    %35 = vector.broadcast %33 : vector<8x1xf32> to vector<8x128xf32>
    %36 = vector.broadcast %34 : vector<1x128xf32> to vector<8x128xf32>
    %37 = arith.subf %35, %36 : vector<8x128xf32>
    %38 = math.absf %37 : vector<8x128xf32>
    %39 = arith.addf %30, %38 : vector<8x128xf32>
    %40 = vector.extract_strided_slice %31 {offsets = [0, 1], sizes = [8, 1], strides = [1, 1]} : vector<8x8xf32> to vector<8x1xf32>
    %41 = vector.extract_strided_slice %32 {offsets = [1, 0], sizes = [1, 128], strides = [1, 1]} : vector<8x128xf32> to vector<1x128xf32>
    %42 = vector.broadcast %40 : vector<8x1xf32> to vector<8x128xf32>
    %43 = vector.broadcast %41 : vector<1x128xf32> to vector<8x128xf32>
    %44 = arith.subf %42, %43 : vector<8x128xf32>
    %45 = math.absf %44 : vector<8x128xf32>
    %46 = arith.addf %39, %45 : vector<8x128xf32>
    %47 = vector.extract_strided_slice %31 {offsets = [0, 2], sizes = [8, 1], strides = [1, 1]} : vector<8x8xf32> to vector<8x1xf32>
    %48 = vector.extract_strided_slice %32 {offsets = [2, 0], sizes = [1, 128], strides = [1, 1]} : vector<8x128xf32> to vector<1x128xf32>
    %49 = vector.broadcast %47 : vector<8x1xf32> to vector<8x128xf32>
    %50 = vector.broadcast %48 : vector<1x128xf32> to vector<8x128xf32>
    %51 = arith.subf %49, %50 : vector<8x128xf32>
    %52 = math.absf %51 : vector<8x128xf32>
    %53 = arith.addf %46, %52 : vector<8x128xf32>
    %54 = vector.extract_strided_slice %31 {offsets = [0, 3], sizes = [8, 1], strides = [1, 1]} : vector<8x8xf32> to vector<8x1xf32>
    %55 = vector.extract_strided_slice %32 {offsets = [3, 0], sizes = [1, 128], strides = [1, 1]} : vector<8x128xf32> to vector<1x128xf32>
    %56 = vector.broadcast %54 : vector<8x1xf32> to vector<8x128xf32>
    %57 = vector.broadcast %55 : vector<1x128xf32> to vector<8x128xf32>
    %58 = arith.subf %56, %57 : vector<8x128xf32>
    %59 = math.absf %58 : vector<8x128xf32>
    %60 = arith.addf %53, %59 : vector<8x128xf32>
    %61 = vector.extract_strided_slice %31 {offsets = [0, 4], sizes = [8, 1], strides = [1, 1]} : vector<8x8xf32> to vector<8x1xf32>
    %62 = vector.extract_strided_slice %31 {offsets = [0, 5], sizes = [8, 1], strides = [1, 1]} : vector<8x8xf32> to vector<8x1xf32>
    %63 = vector.extract_strided_slice %31 {offsets = [0, 6], sizes = [8, 1], strides = [1, 1]} : vector<8x8xf32> to vector<8x1xf32>
    %64 = vector.extract_strided_slice %31 {offsets = [0, 7], sizes = [8, 1], strides = [1, 1]} : vector<8x8xf32> to vector<8x1xf32>
    %65 = vector.extract_strided_slice %32 {offsets = [4, 0], sizes = [1, 128], strides = [1, 1]} : vector<8x128xf32> to vector<1x128xf32>
    %66 = vector.extract_strided_slice %32 {offsets = [5, 0], sizes = [1, 128], strides = [1, 1]} : vector<8x128xf32> to vector<1x128xf32>
    %67 = vector.extract_strided_slice %32 {offsets = [6, 0], sizes = [1, 128], strides = [1, 1]} : vector<8x128xf32> to vector<1x128xf32>
    %68 = vector.extract_strided_slice %32 {offsets = [7, 0], sizes = [1, 128], strides = [1, 1]} : vector<8x128xf32> to vector<1x128xf32>
    %69 = arith.subf %63, %61 : vector<8x1xf32>
    %70 = arith.subf %64, %62 : vector<8x1xf32>
    %71 = arith.mulf %69, %70 : vector<8x1xf32>
    %72 = arith.subf %67, %65 : vector<1x128xf32>
    %73 = arith.subf %68, %66 : vector<1x128xf32>
    %74 = arith.mulf %72, %73 : vector<1x128xf32>
    %75 = vector.broadcast %63 : vector<8x1xf32> to vector<8x128xf32>
    %76 = vector.broadcast %67 : vector<1x128xf32> to vector<8x128xf32>
    %77 = arith.minimumf %75, %76 : vector<8x128xf32>
    %78 = vector.broadcast %61 : vector<8x1xf32> to vector<8x128xf32>
    %79 = vector.broadcast %65 : vector<1x128xf32> to vector<8x128xf32>
    %80 = arith.maximumf %78, %79 : vector<8x128xf32>
    %81 = arith.subf %77, %80 : vector<8x128xf32>
    %cst_16 = arith.constant 0.000000e+00 : f32
    %82 = vector.broadcast %cst_16 : f32 to vector<8x128xf32>
    %83 = arith.maximumf %81, %82 : vector<8x128xf32>
    %84 = vector.broadcast %64 : vector<8x1xf32> to vector<8x128xf32>
    %85 = vector.broadcast %68 : vector<1x128xf32> to vector<8x128xf32>
    %86 = arith.minimumf %84, %85 : vector<8x128xf32>
    %87 = vector.broadcast %62 : vector<8x1xf32> to vector<8x128xf32>
    %88 = vector.broadcast %66 : vector<1x128xf32> to vector<8x128xf32>
    %89 = arith.maximumf %87, %88 : vector<8x128xf32>
    %90 = arith.subf %86, %89 : vector<8x128xf32>
    %cst_17 = arith.constant 0.000000e+00 : f32
    %91 = vector.broadcast %cst_17 : f32 to vector<8x128xf32>
    %92 = arith.maximumf %90, %91 : vector<8x128xf32>
    %93 = arith.mulf %83, %92 : vector<8x128xf32>
    %94 = vector.broadcast %71 : vector<8x1xf32> to vector<8x128xf32>
    %95 = vector.broadcast %74 : vector<1x128xf32> to vector<8x128xf32>
    %96 = arith.addf %94, %95 : vector<8x128xf32>
    %97 = arith.subf %96, %93 : vector<8x128xf32>
    %98 = vector.broadcast %63 : vector<8x1xf32> to vector<8x128xf32>
    %99 = vector.broadcast %67 : vector<1x128xf32> to vector<8x128xf32>
    %100 = arith.maximumf %98, %99 : vector<8x128xf32>
    %101 = vector.broadcast %61 : vector<8x1xf32> to vector<8x128xf32>
    %102 = vector.broadcast %65 : vector<1x128xf32> to vector<8x128xf32>
    %103 = arith.minimumf %101, %102 : vector<8x128xf32>
    %104 = arith.subf %100, %103 : vector<8x128xf32>
    %105 = vector.broadcast %64 : vector<8x1xf32> to vector<8x128xf32>
    %106 = vector.broadcast %68 : vector<1x128xf32> to vector<8x128xf32>
    %107 = arith.maximumf %105, %106 : vector<8x128xf32>
    %108 = vector.broadcast %62 : vector<8x1xf32> to vector<8x128xf32>
    %109 = vector.broadcast %66 : vector<1x128xf32> to vector<8x128xf32>
    %110 = arith.minimumf %108, %109 : vector<8x128xf32>
    %111 = arith.subf %107, %110 : vector<8x128xf32>
    %112 = arith.mulf %104, %111 : vector<8x128xf32>
    %113 = tpu.reciprocal %97 {approx = true} : vector<8x128xf32> -> vector<8x128xf32>
    %114 = arith.mulf %97, %113 : vector<8x128xf32>
    %cst_18 = arith.constant 2.000000e+00 : f32
    %115 = vector.broadcast %cst_18 : f32 to vector<8x128xf32>
    %116 = arith.subf %115, %114 : vector<8x128xf32>
    %117 = arith.mulf %113, %116 : vector<8x128xf32>
    %118 = tpu.reciprocal %112 {approx = true} : vector<8x128xf32> -> vector<8x128xf32>
    %119 = arith.mulf %112, %118 : vector<8x128xf32>
    %cst_19 = arith.constant 2.000000e+00 : f32
    %120 = vector.broadcast %cst_19 : f32 to vector<8x128xf32>
    %121 = arith.subf %120, %119 : vector<8x128xf32>
    %122 = arith.mulf %118, %121 : vector<8x128xf32>
    %123 = arith.mulf %93, %117 : vector<8x128xf32>
    %cst_20 = arith.constant 1.000000e+00 : f32
    %124 = vector.broadcast %cst_20 : f32 to vector<8x128xf32>
    %125 = arith.subf %123, %124 : vector<8x128xf32>
    %126 = arith.mulf %97, %122 : vector<8x128xf32>
    %127 = arith.addf %125, %126 : vector<8x128xf32>
    %cst_21 = arith.constant 2.000000e+00 : f32
    %128 = vector.broadcast %cst_21 : f32 to vector<8x128xf32>
    %129 = arith.mulf %128, %127 : vector<8x128xf32>
    %130 = arith.subf %60, %129 : vector<8x128xf32>
    %c0_22 = arith.constant 0 : index
    %c0_23 = arith.constant 0 : index
    %131 = vector.load %arg6[%c0_22, %c0_23] : memref<8x128xf32, #tpu.memory_space<vmem>>, vector<8x128xf32>
    tpu.vector_store %arg6[%c0_22, %c0_23], %130 {strides = array<i32>} : memref<8x128xf32, #tpu.memory_space<vmem>>, vector<8x128xf32>,
    return
  }
  func.func @transform_0(%arg0: i32, %arg1: i32) -> (i32, i32) {
    %c0_i32 = arith.constant 0 : i32
    %c0_i32_0 = arith.constant 0 : i32
    return %arg0, %c0_i32 : i32, i32
  }
  func.func @transform_1(%arg0: i32, %arg1: i32) -> (i32, i32) {
    %c0_i32 = arith.constant 0 : i32
    %c0_i32_0 = arith.constant 0 : i32
    return %arg0, %c0_i32 : i32, i32
  }
  func.func @transform_2(%arg0: i32, %arg1: i32) -> (i32, i32) {
    %c0_i32 = arith.constant 0 : i32
    %c0_i32_0 = arith.constant 0 : i32
    return %c0_i32, %arg1 : i32, i32
  }
  func.func @transform_3(%arg0: i32, %arg1: i32) -> (i32, i32) {
    %c0_i32 = arith.constant 0 : i32
    %c0_i32_0 = arith.constant 0 : i32
    return %c0_i32, %arg1 : i32, i32
  }
  func.func @transform_4(%arg0: i32, %arg1: i32) -> (i32, i32) {
    %c0_i32 = arith.constant 0 : i32
    return %arg0, %arg1 : i32, i32
  }
}

</mosaic_0001>

<llo_original>
// kernel: _cost_matrix_padded.1
$region0: #{_cost_matrix_padded.1}
  #allocation0 [shape = 'u32[]', space=smem, size = 0x4, offset = 0x4, fixed_abs, tag = 'smem constant byte address 0x4 - core index']
  #allocation1 [shape = 'u32[72,128]{1,0:T(1,128)}', space=vmem, size = 0x9000, scoped, tag = 'internal scratch']
  %s0 = inlined_call_operand.vmem [shape: f32[16,128], index: 0, kind: input, shape index: {}]
  %s1 = inlined_call_operand.vmem [shape: f32[16,8], index: 1, kind: input, shape index: {}]
  %s2 = inlined_call_operand.vmem [shape: f32[128,128], index: 2, kind: input, shape index: {}]
  %s3 = inlined_call_operand.vmem [shape: f32[8,128], index: 3, kind: input, shape index: {}]
  %s4 = inlined_call_operand.hbm [shape: f32[16,128], index: 4, kind: output, shape index: {}]
  %s5 = sld [smem:[#allocation0]]
  $region49: #{_cost_matrix_padded.1} parent=0
    _
  %s7 = ssub.s32 1, %s5
  %s8 = scalar_select 0, %s7, %s5
  $region1: #{_cost_matrix_padded.1} parent=0
    #allocation2 [shape = 'u8[8192]{0}', space=vmem, size = 0x2000, scoped, tag = 'output window, operand 0']
    #allocation3 [shape = 's32[2]{0}', space=sflag, size = 0x8, scoped, tag = 'scoped memory for _cost_matrix_padded.1']
    %9 = vsyncpa [#allocation3], 0
    %s10 = scalar_lea.sflag [#allocation3], 1
    %11 = vsyncpa %s10, 0
    loop: start=0, step=1, limit=4
    $region2: #{_cost_matrix_padded.1} parent=1 // loop_pre_header
      _
    $region3: #{_cost_matrix_padded.1} parent=1 // loop_header
      %s13 = sphi 0, %s17
      %p14 = scmp.ge.s32.totalorder %s13, 4
      %s20 = sphi 0, %s32
      %s21 = sphi 0, %s28
      %s22 = sphi 0, %s20
      %s23 = sphi 0, %s21
      %s24 = sphi 0, %s22
      %s25 = sphi 0, %s23
      %s35 = sphi 0, %s37
      %s38 = sphi 0, %s35
      %s39 = sphi 0, %s38
      %s55 = sphi 0, %s39
      %s61 = sphi 0, %s63
      %s64 = sphi 0, %s61
      %s65 = sphi 0, %s64
      %s81 = sphi 0, %s65
      %s87 = sphi 0, %s89
      %s90 = sphi 0, %s87
      %s91 = sphi 0, %s90
      %s107 = sphi 0, %s91
      %s113 = sphi 0, %s115
      %s116 = sphi 0, %s113
      %s117 = sphi 0, %s116
      %s133 = sphi 0, %s117
      %s141 = sphi 0, %s143
      %s144 = sphi 0, %s141
      %s145 = sphi 0, %s144
      %s161 = sphi 0, %s145
    $region4: #{_cost_matrix_padded.1} parent=1 // loop_header_branch
      %16 = sbr.rel (%p14) target = $region8
    $region5: #{_cost_matrix_padded.1} parent=1 // loop_body
      %s18 = ssub.s32 %s13, 1
      %s19 = ssub.s32 %s13, 2
      %s26 = sadd.s32 1, %s21
      %p27 = scmp.ge.s32.totalorder %s26, 1
      %s28 = scalar_select %p27, 0, %s26
      %s29 = sadd.s32 1, %s20
      %s30 = scalar_select %p27, %s29, %s20
      %p31 = scmp.ge.s32.totalorder %s30, 2
      %s32 = scalar_select %p31, 0, %s30
      %s33 = ssub.s32 %s20, %s32
      %p34 = scmp.eq.s32.totalorder %s33, 0
      %s36 = sadd.s32 %s35, 1
      %s37 = scalar_select %p34, %s35, %s36
      %p40 = pneg %p34
      %p41 = scmp.eq.s32.totalorder %s13, 1
      %p42 = por %p40, %p41
      %p43 = scmp.ne.s32.totalorder %s35, %s38
      %p44 = scmp.eq.s32.totalorder %s13, 0
      %p45 = por %p43, %p44
      %p46 = scmp.ne.s32.totalorder %s35, %s38
      %p47 = scmp.eq.s32.totalorder %s18, 1
      %p48 = por %p46, %p47
      %p49 = scmp.ne.s32.totalorder %s38, %s39
      %p50 = scmp.eq.s32.totalorder %s18, 0
      %p51 = por %p49, %p50
      %p52 = scmp.ne.s32.totalorder %s38, %s39
      %p53 = scmp.eq.s32.totalorder %s19, 1
      %p54 = por %p52, %p53
      %p56 = scmp.ne.s32.totalorder %s39, %s55
      %p57 = scmp.eq.s32.totalorder %s19, 0
      %p58 = por %p56, %p57
      %s59 = ssub.s32 %s20, %s32
      %p60 = scmp.eq.s32.totalorder %s59, 0
      %s62 = sadd.s32 %s61, 1
      %s63 = scalar_select %p60, %s61, %s62
      %p66 = pneg %p60
      %p67 = scmp.eq.s32.totalorder %s13, 1
      %p68 = por %p66, %p67
      %p69 = scmp.ne.s32.totalorder %s61, %s64
      %p70 = scmp.eq.s32.totalorder %s13, 0
      %p71 = por %p69, %p70
      %p72 = scmp.ne.s32.totalorder %s61, %s64
      %p73 = scmp.eq.s32.totalorder %s18, 1
      %p74 = por %p72, %p73
      %p75 = scmp.ne.s32.totalorder %s64, %s65
      %p76 = scmp.eq.s32.totalorder %s18, 0
      %p77 = por %p75, %p76
      %p78 = scmp.ne.s32.totalorder %s64, %s65
      %p79 = scmp.eq.s32.totalorder %s19, 1
      %p80 = por %p78, %p79
      %p82 = scmp.ne.s32.totalorder %s65, %s81
      %p83 = scmp.eq.s32.totalorder %s19, 0
      %p84 = por %p82, %p83
      %s85 = ssub.s32 %s21, %s28
      %p86 = scmp.eq.s32.totalorder %s85, 0
      %s88 = sadd.s32 %s87, 1
      %s89 = scalar_select %p86, %s87, %s88
      %p92 = pneg %p86
      %p93 = scmp.eq.s32.totalorder %s13, 1
      %p94 = por %p92, %p93
      %p95 = scmp.ne.s32.totalorder %s87, %s90
      %p96 = scmp.eq.s32.totalorder %s13, 0
      %p97 = por %p95, %p96
      %p98 = scmp.ne.s32.totalorder %s87, %s90
      %p99 = scmp.eq.s32.totalorder %s18, 1
      %p100 = por %p98, %p99
      %p101 = scmp.ne.s32.totalorder %s90, %s91
      %p102 = scmp.eq.s32.totalorder %s18, 0
      %p103 = por %p101, %p102
      %p104 = scmp.ne.s32.totalorder %s90, %s91
      %p105 = scmp.eq.s32.totalorder %s19, 1
      %p106 = por %p104, %p105
      %p108 = scmp.ne.s32.totalorder %s91, %s107
      %p109 = scmp.eq.s32.totalorder %s19, 0
      %p110 = por %p108, %p109
      %s111 = ssub.s32 %s21, %s28
      %p112 = scmp.eq.s32.totalorder %s111, 0
      %s114 = sadd.s32 %s113, 1
      %s115 = scalar_select %p112, %s113, %s114
      %p118 = pneg %p112
      %p119 = scmp.eq.s32.totalorder %s13, 1
      %p120 = por %p118, %p119
      %p121 = scmp.ne.s32.totalorder %s113, %s116
      %p122 = scmp.eq.s32.totalorder %s13, 0
      %p123 = por %p121, %p122
      %p124 = scmp.ne.s32.totalorder %s113, %s116
      %p125 = scmp.eq.s32.totalorder %s18, 1
      %p126 = por %p124, %p125
      %p127 = scmp.ne.s32.totalorder %s116, %s117
      %p128 = scmp.eq.s32.totalorder %s18, 0
      %p129 = por %p127, %p128
      %p130 = scmp.ne.s32.totalorder %s116, %s117
      %p131 = scmp.eq.s32.totalorder %s19, 1
      %p132 = por %p130, %p131
      %p134 = scmp.ne.s32.totalorder %s117, %s133
      %p135 = scmp.eq.s32.totalorder %s19, 0
      %p136 = por %p134, %p135
      %s137 = ssub.s32 %s20, %s32
      %s138 = ssub.s32 %s21, %s28
      %s139 = sor.u32 %s137, %s138
      %p140 = scmp.eq.s32.totalorder %s139, 0
      %s142 = sadd.s32 %s141, 1
      %s143 = scalar_select %p140, %s141, %s142
      %p146 = pneg %p140
      %p147 = scmp.eq.s32.totalorder %s13, 1
      %p148 = por %p146, %p147
      %p149 = scmp.ne.s32.totalorder %s141, %s144
      %p150 = scmp.eq.s32.totalorder %s13, 0
      %p151 = por %p149, %p150
      %p152 = scmp.ne.s32.totalorder %s141, %s144
      %p153 = scmp.eq.s32.totalorder %s18, 1
      %p154 = por %p152, %p153
      %p155 = scmp.ne.s32.totalorder %s144, %s145
      %p156 = scmp.eq.s32.totalorder %s18, 0
      %p157 = por %p155, %p156
      %p158 = scmp.ne.s32.totalorder %s144, %s145
      %p159 = scmp.eq.s32.totalorder %s19, 1
      %p160 = por %p158, %p159
      %p162 = scmp.ne.s32.totalorder %s145, %s161
      %p163 = scmp.eq.s32.totalorder %s19, 0
      %p164 = por %p162, %p163
      %p165 = scmp.le.s32.totalorder 1, %s13
      %p166 = scmp.lt.s32.totalorder %s13, 3
      %p167 = pnand %p165, %p166
      %p168 = pneg %p167
      // Predicated region
      $region9: #{_cost_matrix_padded.1} parent=5 // pred_check
        _
      $region10: #{_cost_matrix_padded.1} parent=5 // pred_check_branch
        %170 = sbr.rel (%p167) target = $region12
      $region11: #{_cost_matrix_padded.1} parent=5 // pred_region
        %s171 = ssub.s32 %s13, 1
        // Predicated region
        $region13: #{_cost_matrix_padded.1} parent=11 // pred_check
          %p172 = pneg %p103
        $region14: #{_cost_matrix_padded.1} parent=11 // pred_check_branch
          %174 = sbr.rel (%p172) target = $region16
        $region15: #{_cost_matrix_padded.1} parent=11 // pred_region
          %p175 = scmp.lt.s32.totalorder %s23, 0
          %s176 = scalar_select %p175, %s23, 0
          %s177 = smul.addr %s176, 8
          %s178 = scalar_lea.vmem %s2, %s177
        $region16: #{_cost_matrix_padded.1} parent=11 // pred_fallthru
          _
        // Predicated region
        $region17: #{_cost_matrix_padded.1} parent=11 // pred_check
          %p179 = pneg %p129
        $region18: #{_cost_matrix_padded.1} parent=11 // pred_check_branch
          %181 = sbr.rel (%p179) target = $region20
        $region19: #{_cost_matrix_padded.1} parent=11 // pred_region
          %p182 = scmp.lt.s32.totalorder %s23, 0
          %s183 = scalar_select %p182, %s23, 0
          %s184 = smul.addr %s183, 8
          %s185 = scalar_lea.vmem %s3, %s184
        $region20: #{_cost_matrix_padded.1} parent=11 // pred_fallthru
          _
      $region12: #{_cost_matrix_padded.1} parent=5 // pred_fallthru
        _
      %p186 = scmp.lt.s32.totalorder %s13, 2
      // Predicated region
      $region21: #{_cost_matrix_padded.1} parent=5 // pred_check
        %p187 = pneg %p186
      $region22: #{_cost_matrix_padded.1} parent=5 // pred_check_branch
        %189 = sbr.rel (%p187) target = $region24
      $region23: #{_cost_matrix_padded.1} parent=5 // pred_region
        // Predicated region
        $region25: #{_cost_matrix_padded.1} parent=23 // pred_check
          %p190 = pneg %p45
        $region26: #{_cost_matrix_padded.1} parent=23 // pred_check_branch
          %192 = sbr.rel (%p190) target = $region28
        $region27: #{_cost_matrix_padded.1} parent=23 // pred_region
          %p193 = scmp.lt.s32.totalorder %s20, 1
          %s194 = scalar_select %p193, %s20, 1
          %s195 = smul.addr %s194, 8
          %s196 = scalar_lea.vmem %s0, %s195
        $region28: #{_cost_matrix_padded.1} parent=23 // pred_fallthru
          _
        // Predicated region
        $region29: #{_cost_matrix_padded.1} parent=23 // pred_check
          %p197 = pneg %p71
        $region30: #{_cost_matrix_padded.1} parent=23 // pred_check_branch
          %199 = sbr.rel (%p197) target = $region32
        $region31: #{_cost_matrix_padded.1} parent=23 // pred_region
          %p200 = scmp.lt.s32.totalorder %s20, 1
          %s201 = scalar_select %p200, %s20, 1
          %s202 = smul.addr %s201, 8
          %s203 = scalar_lea.vmem %s1, %s202
        $region32: #{_cost_matrix_padded.1} parent=23 // pred_fallthru
          _
      $region24: #{_cost_matrix_padded.1} parent=5 // pred_fallthru
        _
      %p204 = scmp.le.s32.totalorder 1, %s13
      %p205 = scmp.lt.s32.totalorder %s13, 3
      %p206 = pnand %p204, %p205
      %p207 = pneg %p206
      // Predicated region
      $region33: #{_cost_matrix_padded.1} parent=5 // pred_check
        _
      $region34: #{_cost_matrix_padded.1} parent=5 // pred_check_branch
        %209 = sbr.rel (%p206) target = $region36
      $region35: #{_cost_matrix_padded.1} parent=5 // pred_region
        %s210 = ssub.s32 %s13, 1
        %p211 = scmp.lt.s32.totalorder %s22, 1
        %s212 = scalar_select %p211, %s22, 1
        %s213 = smul.addr %s212, 8
        %s214 = scalar_lea.vmem %s0, %s213
        %p215 = pneg %p51
        %p216 = pneg %p48
        %p217 = scmp.lt.s32.totalorder %s22, 1
        %s218 = scalar_select %p217, %s22, 1
        %s219 = smul.addr %s218, 8
        %s220 = scalar_lea.vmem %s1, %s219
        %p221 = pneg %p77
        %p222 = pneg %p74
        %p223 = scmp.lt.s32.totalorder %s23, 0
        %s224 = scalar_select %p223, %s23, 0
        %s225 = smul.addr %s224, 8
        %s226 = scalar_lea.vmem %s2, %s225
        %p227 = pneg %p103
        %p228 = pneg %p100
        %p229 = scmp.lt.s32.totalorder %s23, 0
        %s230 = scalar_select %p229, %s23, 0
        %s231 = smul.addr %s230, 8
        %s232 = scalar_lea.vmem %s3, %s231
        %p233 = pneg %p129
        %p234 = pneg %p126
        %p235 = pneg %p157
        %p236 = pneg %p154
        %s237 = sand.u32 %s144, 1
        %s238 = scalar_lea.sflag [#allocation3], %s237
        %s239 = sand.u32 %s144, 1
        %s240 = smul.addr %s239, 8
        %s241 = scalar_lea.vmem [#allocation2], %s240
        %p242 = scmp.lt.s32.totalorder %s22, 1
        %s243 = scalar_select %p242, %s22, 1
        %s244 = smul.addr %s243, 8
        %s245 = scalar_lea.vmem %s0, %s244
        %p246 = scmp.lt.s32.totalorder %s22, 1
        %s247 = scalar_select %p246, %s22, 1
        %s248 = smul.addr %s247, 8
        %s249 = scalar_lea.vmem %s1, %s248
        %p250 = scmp.lt.s32.totalorder %s23, 0
        %s251 = scalar_select %p250, %s23, 0
        %s252 = smul.addr %s251, 8
        %s253 = scalar_lea.vmem %s2, %s252
        %p254 = scmp.lt.s32.totalorder %s23, 0
        %s255 = scalar_select %p254, %s23, 0
        %s256 = smul.addr %s255, 8
        %s257 = scalar_lea.vmem %s3, %s256
        %v258 = vld [vmem:[%s245] sm:$0xff]
        %v259 = vld [vmem:[%s253] sm:$0xff]
        %v260 = vld [vmem:[%s253 + $0x8] sm:$0xff]
        %v261 = vld [vmem:[%s253 + $0x10] sm:$0xff]
        %v262 = vld [vmem:[%s253 + $0x18] sm:$0xff]
        %v263 = vld [vmem:[%s253 + $0x20] sm:$0xff]
        %v264 = vld [vmem:[%s253 + $0x28] sm:$0xff]
        %v265 = vld [vmem:[%s253 + $0x30] sm:$0xff]
        %v266 = vld [vmem:[%s253 + $0x38] sm:$0xff]
        %v267 = vld [vmem:[%s253 + $0x40] sm:$0xff]
        %v268 = vld [vmem:[%s253 + $0x48] sm:$0xff]
        %v269 = vld [vmem:[%s253 + $0x50] sm:$0xff]
        %v270 = vld [vmem:[%s253 + $0x58] sm:$0xff]
        %v271 = vld [vmem:[%s253 + $0x60] sm:$0xff]
        %v272 = vld [vmem:[%s253 + $0x68] sm:$0xff]
        %v273 = vld [vmem:[%s253 + $0x70] sm:$0xff]
        %v274 = vld [vmem:[%s253 + $0x78] sm:$0xff]
        %v275 = vand.u32 %v274, 4294901760
        %276 = vmatpush.msra.mxu0 %v275
        %v277 = vand.u32 %v273, 4294901760
        %278 = vmatpush.msra.mxu0 %v277
        %v279 = vand.u32 %v272, 4294901760
        %280 = vmatpush.msra.mxu0 %v279
        %v281 = vand.u32 %v271, 4294901760
        %282 = vmatpush.msra.mxu0 %v281
        %v283 = vand.u32 %v270, 4294901760
        %284 = vmatpush.msra.mxu0 %v283
        %v285 = vand.u32 %v269, 4294901760
        %286 = vmatpush.msra.mxu0 %v285
        %v287 = vand.u32 %v268, 4294901760
        %288 = vmatpush.msra.mxu0 %v287
        %v289 = vand.u32 %v267, 4294901760
        %290 = vmatpush.msra.mxu0 %v289
        %v291 = vand.u32 %v266, 4294901760
        %292 = vmatpush.msra.mxu0 %v291
        %v293 = vand.u32 %v265, 4294901760
        %294 = vmatpush.msra.mxu0 %v293
        %v295 = vand.u32 %v264, 4294901760
        %296 = vmatpush.msra.mxu0 %v295
        %v297 = vand.u32 %v263, 4294901760
        %298 = vmatpush.msra.mxu0 %v297
        %v299 = vand.u32 %v262, 4294901760
        %300 = vmatpush.msra.mxu0 %v299
        %v301 = vand.u32 %v261, 4294901760
        %302 = vmatpush.msra.mxu0 %v301
        %v303 = vand.u32 %v260, 4294901760
        %304 = vmatpush.msra.mxu0 %v303
        %v305 = vand.u32 %v259, 4294901760
        %306 = vmatpush.msra.mxu0 %v305
        %v307 = vand.u32 %v258, 4294901760
        %v308 = vsub.f32 %v258, %v307
        %v309 = vand.u32 %v308, 4294901760
        %v310 = vsub.f32 %v308, %v309
        %v311 = vand.u32 %v310, 4294901760
        %312 = vmatmul.f32.gmra.mxu0 %v311
        %v313 = vpop.f32.mrf.mxu0
        %v314 = vadd.f32 0.0, %v313
        %315 = vdwg.mxu0
        %v316 = vand.u32 %v274, 4294901760
        %v317 = vsub.f32 %v274, %v316
        %v318 = vand.u32 %v317, 4294901760
        %v319 = vsub.f32 %v317, %v318
        %v320 = vand.u32 %v319, 4294901760
        %321 = vmatpush.msra.mxu0 %v320
        %v322 = vand.u32 %v273, 4294901760
        %v323 = vsub.f32 %v273, %v322
        %v324 = vand.u32 %v323, 4294901760
        %v325 = vsub.f32 %v323, %v324
        %v326 = vand.u32 %v325, 4294901760
        %327 = vmatpush.msra.mxu0 %v326
        %v328 = vand.u32 %v272, 4294901760
        %v329 = vsub.f32 %v272, %v328
        %v330 = vand.u32 %v329, 4294901760
        %v331 = vsub.f32 %v329, %v330
        %v332 = vand.u32 %v331, 4294901760
        %333 = vmatpush.msra.mxu0 %v332
        %v334 = vand.u32 %v271, 4294901760
        %v335 = vsub.f32 %v271, %v334
        %v336 = vand.u32 %v335, 4294901760
        %v337 = vsub.f32 %v335, %v336
        %v338 = vand.u32 %v337, 4294901760
        %339 = vmatpush.msra.mxu0 %v338
        %v340 = vand.u32 %v270, 4294901760
        %v341 = vsub.f32 %v270, %v340
        %v342 = vand.u32 %v341, 4294901760
        %v343 = vsub.f32 %v341, %v342
        %v344 = vand.u32 %v343, 4294901760
        %345 = vmatpush.msra.mxu0 %v344
        %v346 = vand.u32 %v269, 4294901760
        %v347 = vsub.f32 %v269, %v346
        %v348 = vand.u32 %v347, 4294901760
        %v349 = vsub.f32 %v347, %v348
        %v350 = vand.u32 %v349, 4294901760
        %351 = vmatpush.msra.mxu0 %v350
        %v352 = vand.u32 %v268, 4294901760
        %v353 = vsub.f32 %v268, %v352
        %v354 = vand.u32 %v353, 4294901760
        %v355 = vsub.f32 %v353, %v354
        %v356 = vand.u32 %v355, 4294901760
        %357 = vmatpush.msra.mxu0 %v356
        %v358 = vand.u32 %v267, 4294901760
        %v359 = vsub.f32 %v267, %v358
        %v360 = vand.u32 %v359, 4294901760
        %v361 = vsub.f32 %v359, %v360
        %v362 = vand.u32 %v361, 4294901760
        %363 = vmatpush.msra.mxu0 %v362
        %v364 = vand.u32 %v266, 4294901760
        %v365 = vsub.f32 %v266, %v364
        %v366 = vand.u32 %v365, 4294901760
        %v367 = vsub.f32 %v365, %v366
        %v368 = vand.u32 %v367, 4294901760
        %369 = vmatpush.msra.mxu0 %v368
        %v370 = vand.u32 %v265, 4294901760
        %v371 = vsub.f32 %v265, %v370
        %v372 = vand.u32 %v371, 4294901760
        %v373 = vsub.f32 %v371, %v372
        %v374 = vand.u32 %v373, 4294901760
        %375 = vmatpush.msra.mxu0 %v374
        %v376 = vand.u32 %v264, 4294901760
        %v377 = vsub.f32 %v264, %v376
        %v378 = vand.u32 %v377, 4294901760
        %v379 = vsub.f32 %v377, %v378
        %v380 = vand.u32 %v379, 4294901760
        %381 = vmatpush.msra.mxu0 %v380
        %v382 = vand.u32 %v263, 4294901760
        %v383 = vsub.f32 %v263, %v382
        %v384 = vand.u32 %v383, 4294901760
        %v385 = vsub.f32 %v383, %v384
        %v386 = vand.u32 %v385, 4294901760
        %387 = vmatpush.msra.mxu0 %v386
        %v388 = vand.u32 %v262, 4294901760
        %v389 = vsub.f32 %v262, %v388
        %v390 = vand.u32 %v389, 4294901760
        %v391 = vsub.f32 %v389, %v390
        %v392 = vand.u32 %v391, 4294901760
        %393 = vmatpush.msra.mxu0 %v392
        %v394 = vand.u32 %v261, 4294901760
        %v395 = vsub.f32 %v261, %v394
        %v396 = vand.u32 %v395, 4294901760
        %v397 = vsub.f32 %v395, %v396
        %v398 = vand.u32 %v397, 4294901760
        %399 = vmatpush.msra.mxu0 %v398
        %v400 = vand.u32 %v260, 4294901760
        %v401 = vsub.f32 %v260, %v400
        %v402 = vand.u32 %v401, 4294901760
        %v403 = vsub.f32 %v401, %v402
        %v404 = vand.u32 %v403, 4294901760
        %405 = vmatpush.msra.mxu0 %v404
        %v406 = vand.u32 %v259, 4294901760
        %v407 = vsub.f32 %v259, %v406
        %v408 = vand.u32 %v407, 4294901760
        %v409 = vsub.f32 %v407, %v408
        %v410 = vand.u32 %v409, 4294901760
        %411 = vmatpush.msra.mxu0 %v410
        %v412 = vand.u32 %v258, 4294901760
        %413 = vmatmul.f32.gmra.mxu0 %v412
        %v414 = vpop.f32.mrf.mxu0
        %v415 = vadd.f32 %v314, %v414
        %416 = vdwg.mxu0
        %v417 = vand.u32 %v274, 4294901760
        %v418 = vsub.f32 %v274, %v417
        %419 = vmatpush.msra.mxu0 %v418
        %v420 = vand.u32 %v273, 4294901760
        %v421 = vsub.f32 %v273, %v420
        %422 = vmatpush.msra.mxu0 %v421
        %v423 = vand.u32 %v272, 4294901760
        %v424 = vsub.f32 %v272, %v423
        %425 = vmatpush.msra.mxu0 %v424
        %v426 = vand.u32 %v271, 4294901760
        %v427 = vsub.f32 %v271, %v426
        %428 = vmatpush.msra.mxu0 %v427
        %v429 = vand.u32 %v270, 4294901760
        %v430 = vsub.f32 %v270, %v429
        %431 = vmatpush.msra.mxu0 %v430
        %v432 = vand.u32 %v269, 4294901760
        %v433 = vsub.f32 %v269, %v432
        %434 = vmatpush.msra.mxu0 %v433
        %v435 = vand.u32 %v268, 4294901760
        %v436 = vsub.f32 %v268, %v435
        %437 = vmatpush.msra.mxu0 %v436
        %v438 = vand.u32 %v267, 4294901760
        %v439 = vsub.f32 %v267, %v438
        %440 = vmatpush.msra.mxu0 %v439
        %v441 = vand.u32 %v266, 4294901760
        %v442 = vsub.f32 %v266, %v441
        %443 = vmatpush.msra.mxu0 %v442
        %v444 = vand.u32 %v265, 4294901760
        %v445 = vsub.f32 %v265, %v444
        %446 = vmatpush.msra.mxu0 %v445
        %v447 = vand.u32 %v264, 4294901760
        %v448 = vsub.f32 %v264, %v447
        %449 = vmatpush.msra.mxu0 %v448
        %v450 = vand.u32 %v263, 4294901760
        %v451 = vsub.f32 %v263, %v450
        %452 = vmatpush.msra.mxu0 %v451
        %v453 = vand.u32 %v262, 4294901760
        %v454 = vsub.f32 %v262, %v453
        %455 = vmatpush.msra.mxu0 %v454
        %v456 = vand.u32 %v261, 4294901760
        %v457 = vsub.f32 %v261, %v456
        %458 = vmatpush.msra.mxu0 %v457
        %v459 = vand.u32 %v260, 4294901760
        %v460 = vsub.f32 %v260, %v459
        %461 = vmatpush.msra.mxu0 %v460
        %v462 = vand.u32 %v259, 4294901760
        %v463 = vsub.f32 %v259, %v462
        %464 = vmatpush.msra.mxu0 %v463
        %v465 = vand.u32 %v258, 4294901760
        %v466 = vsub.f32 %v258, %v465
        %467 = vmatmul.f32.gmra.mxu0 %v466
        %v468 = vpop.f32.mrf.mxu0
        %v469 = vadd.f32 %v415, %v468
        %470 = vdwg.mxu0
        %v471 = vand.u32 %v274, 4294901760
        %472 = vmatpush.msra.mxu0 %v471
        %v473 = vand.u32 %v273, 4294901760
        %474 = vmatpush.msra.mxu0 %v473
        %v475 = vand.u32 %v272, 4294901760
        %476 = vmatpush.msra.mxu0 %v475
        %v477 = vand.u32 %v271, 4294901760
        %478 = vmatpush.msra.mxu0 %v477
        %v479 = vand.u32 %v270, 4294901760
        %480 = vmatpush.msra.mxu0 %v479
        %v481 = vand.u32 %v269, 4294901760
        %482 = vmatpush.msra.mxu0 %v481
        %v483 = vand.u32 %v268, 4294901760
        %484 = vmatpush.msra.mxu0 %v483
        %v485 = vand.u32 %v267, 4294901760
        %486 = vmatpush.msra.mxu0 %v485
        %v487 = vand.u32 %v266, 4294901760
        %488 = vmatpush.msra.mxu0 %v487
        %v489 = vand.u32 %v265, 4294901760
        %490 = vmatpush.msra.mxu0 %v489
        %v491 = vand.u32 %v264, 4294901760
        %492 = vmatpush.msra.mxu0 %v491
        %v493 = vand.u32 %v263, 4294901760
        %494 = vmatpush.msra.mxu0 %v493
        %v495 = vand.u32 %v262, 4294901760
        %496 = vmatpush.msra.mxu0 %v495
        %v497 = vand.u32 %v261, 4294901760
        %498 = vmatpush.msra.mxu0 %v497
        %v499 = vand.u32 %v260, 4294901760
        %500 = vmatpush.msra.mxu0 %v499
        %v501 = vand.u32 %v259, 4294901760
        %502 = vmatpush.msra.mxu0 %v501
        %v503 = vand.u32 %v258, 4294901760
        %v504 = vsub.f32 %v258, %v503
        %v505 = vand.u32 %v504, 4294901760
        %506 = vmatmul.f32.gmra.mxu0 %v505
        %v507 = vpop.f32.mrf.mxu0
        %v508 = vadd.f32 %v469, %v507
        %509 = vdwg.mxu0
        %v510 = vand.u32 %v274, 4294901760
        %v511 = vsub.f32 %v274, %v510
        %v512 = vand.u32 %v511, 4294901760
        %513 = vmatpush.msra.mxu0 %v512
        %v514 = vand.u32 %v273, 4294901760
        %v515 = vsub.f32 %v273, %v514
        %v516 = vand.u32 %v515, 4294901760
        %517 = vmatpush.msra.mxu0 %v516
        %v518 = vand.u32 %v272, 4294901760
        %v519 = vsub.f32 %v272, %v518
        %v520 = vand.u32 %v519, 4294901760
        %521 = vmatpush.msra.mxu0 %v520
        %v522 = vand.u32 %v271, 4294901760
        %v523 = vsub.f32 %v271, %v522
        %v524 = vand.u32 %v523, 4294901760
        %525 = vmatpush.msra.mxu0 %v524
        %v526 = vand.u32 %v270, 4294901760
        %v527 = vsub.f32 %v270, %v526
        %v528 = vand.u32 %v527, 4294901760
        %529 = vmatpush.msra.mxu0 %v528
        %v530 = vand.u32 %v269, 4294901760
        %v531 = vsub.f32 %v269, %v530
        %v532 = vand.u32 %v531, 4294901760
        %533 = vmatpush.msra.mxu0 %v532
        %v534 = vand.u32 %v268, 4294901760
        %v535 = vsub.f32 %v268, %v534
        %v536 = vand.u32 %v535, 4294901760
        %537 = vmatpush.msra.mxu0 %v536
        %v538 = vand.u32 %v267, 4294901760
        %v539 = vsub.f32 %v267, %v538
        %v540 = vand.u32 %v539, 4294901760
        %541 = vmatpush.msra.mxu0 %v540
        %v542 = vand.u32 %v266, 4294901760
        %v543 = vsub.f32 %v266, %v542
        %v544 = vand.u32 %v543, 4294901760
        %545 = vmatpush.msra.mxu0 %v544
        %v546 = vand.u32 %v265, 4294901760
        %v547 = vsub.f32 %v265, %v546
        %v548 = vand.u32 %v547, 4294901760
        %549 = vmatpush.msra.mxu0 %v548
        %v550 = vand.u32 %v264, 4294901760
        %v551 = vsub.f32 %v264, %v550
        %v552 = vand.u32 %v551, 4294901760
        %553 = vmatpush.msra.mxu0 %v552
        %v554 = vand.u32 %v263, 4294901760
        %v555 = vsub.f32 %v263, %v554
        %v556 = vand.u32 %v555, 4294901760
        %557 = vmatpush.msra.mxu0 %v556
        %v558 = vand.u32 %v262, 4294901760
        %v559 = vsub.f32 %v262, %v558
        %v560 = vand.u32 %v559, 4294901760
        %561 = vmatpush.msra.mxu0 %v560
        %v562 = vand.u32 %v261, 4294901760
        %v563 = vsub.f32 %v261, %v562
        %v564 = vand.u32 %v563, 4294901760
        %565 = vmatpush.msra.mxu0 %v564
        %v566 = vand.u32 %v260, 4294901760
        %v567 = vsub.f32 %v260, %v566
        %v568 = vand.u32 %v567, 4294901760
        %569 = vmatpush.msra.mxu0 %v568
        %v570 = vand.u32 %v259, 4294901760
        %v571 = vsub.f32 %v259, %v570
        %v572 = vand.u32 %v571, 4294901760
        %573 = vmatpush.msra.mxu0 %v572
        %v574 = vand.u32 %v258, 4294901760
        %575 = vmatmul.f32.gmra.mxu0 %v574
        %v576 = vpop.f32.mrf.mxu0
        %v577 = vadd.f32 %v508, %v576
        %578 = vdwg.mxu0
        %v579 = vand.u32 %v274, 4294901760
        %580 = vmatpush.msra.mxu0 %v579
        %v581 = vand.u32 %v273, 4294901760
        %582 = vmatpush.msra.mxu0 %v581
        %v583 = vand.u32 %v272, 4294901760
        %584 = vmatpush.msra.mxu0 %v583
        %v585 = vand.u32 %v271, 4294901760
        %586 = vmatpush.msra.mxu0 %v585
        %v587 = vand.u32 %v270, 4294901760
        %588 = vmatpush.msra.mxu0 %v587
        %v589 = vand.u32 %v269, 4294901760
        %590 = vmatpush.msra.mxu0 %v589
        %v591 = vand.u32 %v268, 4294901760
        %592 = vmatpush.msra.mxu0 %v591
        %v593 = vand.u32 %v267, 4294901760
        %594 = vmatpush.msra.mxu0 %v593
        %v595 = vand.u32 %v266, 4294901760
        %596 = vmatpush.msra.mxu0 %v595
        %v597 = vand.u32 %v265, 4294901760
        %598 = vmatpush.msra.mxu0 %v597
        %v599 = vand.u32 %v264, 4294901760
        %600 = vmatpush.msra.mxu0 %v599
        %v601 = vand.u32 %v263, 4294901760
        %602 = vmatpush.msra.mxu0 %v601
        %v603 = vand.u32 %v262, 4294901760
        %604 = vmatpush.msra.mxu0 %v603
        %v605 = vand.u32 %v261, 4294901760
        %606 = vmatpush.msra.mxu0 %v605
        %v607 = vand.u32 %v260, 4294901760
        %608 = vmatpush.msra.mxu0 %v607
        %v609 = vand.u32 %v259, 4294901760
        %610 = vmatpush.msra.mxu0 %v609
        %v611 = vand.u32 %v258, 4294901760
        %612 = vmatmul.f32.gmra.mxu0 %v611
        %v613 = vpop.f32.mrf.mxu0
        %v614 = vadd.f32 %v577, %v613
        %615 = vdwg.mxu0
        %v616 = vxor.u32 %v614, 2147483648
        %v617 = vmul.f32 %v616, 1.442695
        %v618 = vpow.pop %v617
        %v619 = vadd.f32 %v618, 1.0
        %v620 = vrcp.pop %v619
        %v621 = vmul.f32 %v619, %v620
        %v622 = vsub.f32 1.0, %v621
        %v623 = vmul.f32 %v620, %v622
        %v624 = vadd.f32 %v620, %v623
        %vm625 = vweird.f32 %v619
        %vm626 = vweird.f32 %v620
        %vm627 = vmor %vm625, %vm626
        %v628 = vsel %vm627, %v620, %v624
        %v629 = vand.u32 2147483647, %v619
        %vm630 = vcmp.eq.f32.partialorder %v629, 8.507059e+37
        %v631 = vand.u32 %v619, 2147483648
        %v632 = vor.u32 1.1754944e-38, %v631
        %v633 = vsel %vm630, %v632, %v628
        %v634 = vmul.f32 1.0, %v633
        %v635 = vsub.f32 1.0, %v634
        %v636 = vmul.f32 %v635, %v635
        %v637 = vmul.f32 %v636, 0.5
        %v638 = vadd.f32 %v634, 1e-08
        %v639 = vlog2.pop %v638
        %v640 = vmul.f32 %v639, 0.6931472
        %v641 = vsub.f32 0.0, %v640
        %v642 = vmul.f32 %v637, %v641
        %v643 = vmul.f32 %v634, %v634
        %v644 = vmul.f32 %v643, 1.5
        %v645 = vadd.f32 %v635, 1e-08
        %v646 = vlog2.pop %v645
        %v647 = vmul.f32 %v646, 0.6931472
        %v648 = vsub.f32 0.0, %v647
        %v649 = vmul.f32 %v644, %v648
        %v650 = vsub.f32 %v642, %v649
        %v651 = vld [vmem:[%s249] sm:$0xff]
        %v652 = vld [vmem:[%s257] sm:$0xff]
        %654 = vset.pattern.permute.xlu0 0
        %655 = vperm.xlu0 %654, %v651
        %v656 = vpop.permute.xlu0 %655
        %v658 = vperm.slane %v652, 0
        %v659 = vsub.f32 %v656, %v658
        %v660 = vand.u32 2147483647, %v659
        %v661 = vadd.f32 %v650, %v660
        %662 = vset.pattern.permute.xlu0 1
        %663 = vperm.xlu0 %662, %v651
        %v664 = vpop.permute.xlu0 %663
        %v666 = vperm.slane %v652, 1
        %v667 = vsub.f32 %v664, %v666
        %v668 = vand.u32 2147483647, %v667
        %v669 = vadd.f32 %v661, %v668
        %670 = vset.pattern.permute.xlu0 2
        %671 = vperm.xlu0 %670, %v651
        %v672 = vpop.permute.xlu0 %671
        %v674 = vperm.slane %v652, 2
        %v675 = vsub.f32 %v672, %v674
        %v676 = vand.u32 2147483647, %v675
        %v677 = vadd.f32 %v669, %v676
        %678 = vset.pattern.permute.xlu0 3
        %679 = vperm.xlu0 %678, %v651
        %v680 = vpop.permute.xlu0 %679
        %v682 = vperm.slane %v652, 3
        %v683 = vsub.f32 %v680, %v682
        %v684 = vand.u32 2147483647, %v683
        %v685 = vadd.f32 %v677, %v684
        %686 = vrot.lane.b32.xlu0 %v651, 2
        %v687 = vpop.permute.xlu0 %686
        %v689 = vsub.f32 %v651, %v687
        %691 = vrot.lane.b32.xlu0 %v689, 127
        %v692 = vpop.permute.xlu0 %691
        %v694 = vmul.f32 %v689, %v692
        %v696 = vrot.slane %v652, 6
        %v698 = vsub.f32 %v652, %v696
        %v700 = vrot.slane %v698, 1
        %v702 = vmul.f32 %v698, %v700
        %703 = vset.pattern.permute.xlu0 6
        %704 = vperm.xlu0 %703, %v651
        %v705 = vpop.permute.xlu0 %704
        %v707 = vperm.slane %v652, 6
        %v708 = vmin.f32 %v705, %v707
        %709 = vset.pattern.permute.xlu0 4
        %710 = vperm.xlu0 %709, %v651
        %v711 = vpop.permute.xlu0 %710
        %v713 = vperm.slane %v652, 4
        %v714 = vmax.f32 %v711, %v713
        %v715 = vsub.f32 %v708, %v714
        %v716 = vmax.f32 %v715, 0.0
        %717 = vset.pattern.permute.xlu0 7
        %718 = vperm.xlu0 %717, %v651
        %v719 = vpop.permute.xlu0 %718
        %v721 = vperm.slane %v652, 7
        %v722 = vmin.f32 %v719, %v721
        %723 = vset.pattern.permute.xlu0 5
        %724 = vperm.xlu0 %723, %v651
        %v725 = vpop.permute.xlu0 %724
        %v727 = vperm.slane %v652, 5
        %v728 = vmax.f32 %v725, %v727
        %v729 = vsub.f32 %v722, %v728
        %v730 = vmax.f32 %v729, 0.0
        %v731 = vmul.f32 %v716, %v730
        %733 = vset.pattern.permute.xlu0 6
        %734 = vperm.xlu0 %733, %v694
        %v735 = vpop.permute.xlu0 %734
        %v737 = vperm.slane %v702, 6
        %v738 = vadd.f32 %v735, %v737
        %v739 = vsub.f32 %v738, %v731
        %v740 = vmax.f32 %v705, %v707
        %v741 = vmin.f32 %v711, %v713
        %v742 = vsub.f32 %v740, %v741
        %v743 = vmax.f32 %v719, %v721
        %v744 = vmin.f32 %v725, %v727
        %v745 = vsub.f32 %v743, %v744
        %v746 = vmul.f32 %v742, %v745
        %v747 = vrcp.pop %v739
        %v748 = vmul.f32 %v739, %v747
        %v749 = vsub.f32 2.0, %v748
        %v750 = vmul.f32 %v747, %v749
        %v751 = vrcp.pop %v746
        %v752 = vmul.f32 %v746, %v751
        %v753 = vsub.f32 2.0, %v752
        %v754 = vmul.f32 %v751, %v753
        %v755 = vmul.f32 %v731, %v750
        %v756 = vsub.f32 %v755, 1.0
        %v757 = vmul.f32 %v739, %v754
        %v758 = vadd.f32 %v756, %v757
        %v759 = vmul.f32 %v758, 2.0
        %v760 = vsub.f32 %v685, %v759
        %761 = vst [vmem:[%s241] sm:$0xff] %v760
        %s762 = sand.u32 %s144, 1
        %s763 = scalar_lea.sflag [#allocation3], %s762
        %s764 = sand.u32 %s144, 1
        %s765 = smul.addr %s764, 8
        %s766 = scalar_lea.vmem [#allocation2], %s765
        // Predicated region
        $region37: #{_cost_matrix_padded.1} parent=35 // pred_check
          %p767 = pneg %p154
        $region38: #{_cost_matrix_padded.1} parent=35 // pred_check_branch
          %769 = sbr.rel (%p767) target = $region40
        $region39: #{_cost_matrix_padded.1} parent=35 // pred_region
          %771 = vsyncadd %s763, 0
          %s772 = sadd.s32 %s23, %s22
          %s773 = smul.addr %s772, 8
          %s774 = scalar_lea.hbm %s4, %s773
          %s776 = sshll.u32 %s766, 4
          %s777 = int_to_ptr.vmem [resolvable:$true] %s776
          %s778 = sshll.u32 %s774, 4
          %s779 = int_to_ptr.hbm [resolvable:$true] %s778
          %781 = dma.vmem_to_hbm [thread:$0]  %s777, 128, %s779, %s763
        $region40: #{_cost_matrix_padded.1} parent=35 // pred_fallthru
          _
      $region36: #{_cost_matrix_padded.1} parent=5 // pred_fallthru
        _
      %p782 = scmp.le.s32.totalorder 2, %s13
      // Predicated region
      $region41: #{_cost_matrix_padded.1} parent=5 // pred_check
        %p783 = pneg %p782
      $region42: #{_cost_matrix_padded.1} parent=5 // pred_check_branch
        %785 = sbr.rel (%p783) target = $region44
      $region43: #{_cost_matrix_padded.1} parent=5 // pred_region
        %s786 = ssub.s32 %s13, 2
        // Predicated region
        $region45: #{_cost_matrix_padded.1} parent=43 // pred_check
          %p787 = pneg %p160
        $region46: #{_cost_matrix_padded.1} parent=43 // pred_check_branch
          %789 = sbr.rel (%p787) target = $region48
        $region47: #{_cost_matrix_padded.1} parent=43 // pred_region
          %s790 = sand.u32 %s145, 1
          %s791 = scalar_lea.sflag [#allocation3], %s790
          %s792 = sand.u32 %s145, 1
          %s793 = smul.addr %s792, 8
          %s794 = scalar_lea.vmem [#allocation2], %s793
          %796 = dma.done %s791, 128
        $region48: #{_cost_matrix_padded.1} parent=43 // pred_fallthru
          _
      $region44: #{_cost_matrix_padded.1} parent=5 // pred_fallthru
        _
    $region6: #{_cost_matrix_padded.1} parent=1 // loop_footer
      %s17 = sadd.s32 1, %s13
    $region7: #{_cost_matrix_padded.1} parent=1 // loop_footer_branch
      %12 = sbr.rel target = $region3
    $region8: #{_cost_matrix_padded.1} parent=1 // loop_exit
      _
    %797 = vsyncpa [#allocation3], 1
    %s798 = scalar_lea.sflag [#allocation3], 1
    %799 = vsyncpa %s798, 1

</llo_original>
